<compile_context>
chip_gen: v6e
topology: v6e:2x2x1
jax: 0.10.0
libtpu: 0.0.40
codegen_flags: <defaults>
</compile_context>

<pallas_src>
import math
import functools

import jax
import jax.numpy as jnp
from jax import lax
from jax.experimental import pallas as pl
from jax.experimental.pallas import tpu as pltpu


def _round_up(x, m):
    return (x + m - 1) // m * m


# --------------------------------------------------------------------------- #
# Pallas kernel: frame-wise YIN f0 estimation (samples on sublanes, frames on lanes)
# --------------------------------------------------------------------------- #
def _yin_kernel(xt_ref, f0_ref, d_ref, *, tau_min, tau_max, fs, threshold, t_pad):
    f32 = jnp.float32
    Fl = f0_ref.shape[1]            # frames in this tile (lane axis)

    # ---------------- difference function ----------------
    # d[t, f] = sum_{j=0}^{tau_max-1} (x[j, f] - x[j+t, f])^2
    d_ref[...] = jnp.zeros_like(d_ref)

    def _acc_chunk(blk, rows):
        # blk: [t_pad + 8, Fl] samples base .. base+t_pad+7 of every frame
        contrib = None
        for r in rows:
            a = blk[r:r + 1, :]                 # sample j        -> broadcast over tau
            b = blk[r:r + t_pad, :]             # samples j..j+Tp-1 (tau on sublanes)
            diff = b - a
            sq = diff * diff
            contrib = sq if contrib is None else contrib + sq
        return contrib

    n_full = tau_max // 8
    rem = tau_max - n_full * 8

    if n_full > 0:
        def body(c, carry):
            base = pl.multiple_of(c * 8, 8)
            blk = xt_ref[pl.ds(base, t_pad + 8), :]
            d_ref[...] += _acc_chunk(blk, range(8))
            return carry
        lax.fori_loop(0, n_full, body, 0)

    if rem > 0:
        blk = xt_ref[pl.ds(n_full * 8, t_pad + 8), :]
        d_ref[...] += _acc_chunk(blk, range(rem))

    d = d_ref[...]                                              # [Tp, Fl]

    # ---------------- cumulative-mean-normalized difference ----------------
    #   cmndf(t) = d(t) * t / max(sum_{s=1..t} d(s), 1e-5)
    tau_i = lax.broadcasted_iota(jnp.int32, (t_pad, Fl), 0)     # lag index (sublane)
    tau_f = tau_i.astype(f32)

    row_t = lax.broadcasted_iota(jnp.int32, (t_pad, t_pad), 0)  # built once per tile
    col_s = lax.broadcasted_iota(jnp.int32, (t_pad, t_pad), 1)
    tri = ((col_s >= 1) & (col_s <= row_t)).astype(f32)
    csum = jnp.dot(tri, d, preferred_element_type=f32)          # [Tp, Fl]
    cmndf = d * tau_f / jnp.maximum(csum, 1e-5)

    # ---------------- threshold search (torch-yin _search semantics) ----------------
    K = tau_max - 1 - tau_min
    k_idx = tau_i - (tau_min + 1)
    valid = (tau_i >= tau_min + 1) & (tau_i <= tau_max - 1)
    sentinel = jnp.int32(K)

    below = valid & (cmndf < threshold)
    m = jnp.min(jnp.where(below, k_idx, sentinel), axis=0, keepdims=True)   # [1, Fl]
    first_below = jnp.where((m > 0) & (m < sentinel), m, tau_max)           # argmax==0 -> non-periodic
    beyond = k_idx >= first_below

    # increasing-slope mask: cmndf[t+1] via a static sublane shift; last candidate forced True
    nxt = jnp.concatenate([cmndf[1:, :], jnp.zeros((1, Fl), f32)], axis=0)
    slope = ((nxt - cmndf) >= 0.0) | (tau_i == tau_max - 1)

    cand = valid & beyond & slope
    m2 = jnp.min(jnp.where(cand, k_idx, sentinel), axis=0, keepdims=True)
    tau_sel = jnp.where(m2 < sentinel, m2, 0)                   # argmax semantics: 0 if none
    f0 = jnp.where(
        tau_sel > 0,
        f32(fs) / (tau_sel + (tau_min + 1)).astype(f32),
        f32(0.0),
    )                                                           # [1, Fl]
    f0_ref[...] = jnp.broadcast_to(f0, f0_ref.shape)            # lane-dense output


def _yin_estimate_batch(xs, *, fs, f0min, f0max, hop, threshold=0.1, tile_f=256):
    """Frame-wise YIN f0 of a list of 1-D signals (one pallas_call for all).

    Returns a list of float32 [n_frames_i] arrays, one per signal.
    """
    tau_min = int(fs / f0max)
    tau_max = int(fs / f0min)
    frame_length = 2 * tau_max
    t_pad = _round_up(tau_max, 8)
    w_pad = _round_up(max(frame_length, tau_max + t_pad + 8), 8)

    frames_t, counts = [], []
    for x in xs:
        L = int(x.shape[0])
        if L < frame_length:
            x = jnp.pad(x, (0, frame_length - L))
            L = frame_length
        n_frames = 1 + (L - frame_length) // hop
        idx = (jnp.arange(n_frames) * hop)[:, None] + jnp.arange(frame_length)[None, :]
        frames = x[idx].astype(jnp.float32)                     # [n_frames, frame_length]
        frames_t.append(frames.T)                               # [frame_length, n_frames]
        counts.append(n_frames)

    xt = jnp.concatenate(frames_t, axis=1)                      # [frame_length, F_total]
    f_total = sum(counts)
    tile_f = min(tile_f, _round_up(f_total, 128))
    f_padded = _round_up(f_total, tile_f)
    xt_p = jnp.zeros((w_pad, f_padded), jnp.float32).at[:frame_length, :f_total].set(xt)

    kern = functools.partial(
        _yin_kernel, tau_min=tau_min, tau_max=tau_max, fs=fs,
        threshold=threshold, t_pad=t_pad,
    )
    out = pl.pallas_call(
        kern,
        grid=(f_padded // tile_f,),
        in_specs=[pl.BlockSpec((w_pad, tile_f), lambda i: (0, i))],
        out_specs=pl.BlockSpec((8, tile_f), lambda i: (0, i)),
        out_shape=jax.ShapeDtypeStruct((8, f_padded), jnp.float32),
        scratch_shapes=[pltpu.VMEM((t_pad, tile_f), jnp.float32)],
        compiler_params=pltpu.CompilerParams(
            dimension_semantics=("parallel",),
            vmem_limit_bytes=32 * 1024 * 1024,
        ),
    )(xt_p)

    f0_all = out[0, :f_total]
    outs, start = [], 0
    for c in counts:
        outs.append(f0_all[start:start + c])
        start += c
    return outs


# --------------------------------------------------------------------------- #
# Plain-JAX glue reproducing the module's forward()
# --------------------------------------------------------------------------- #
def _adjust_num_frames(x, num_frames):
    n = int(x.shape[0])
    if num_frames > n:
        diff = num_frames - n
        x = jnp.pad(x, (math.ceil(diff / 2), math.floor(diff / 2)))
    elif num_frames < n:
        x = x[:num_frames]
    return x


def _average_by_duration(x, d, reduction_factor=1):
    d = [int(v) for v in d]
    assert 0 <= int(x.shape[0]) - sum(d) < reduction_factor
    outs, start = [], 0
    for dur in d:
        seg = x[start:start + dur]
        pos = seg > 0.0
        cnt = jnp.sum(pos)
        ssum = jnp.sum(jnp.where(pos, seg, 0.0))
        outs.append(jnp.where(cnt > 0, ssum / jnp.maximum(cnt, 1), jnp.float32(0.0)))
        start += dur
    return jnp.stack(outs)


class YinPallas:
    """F0 estimation (YIN) — Pallas TPU port of PitchCalculator_Yin.Yin."""

    def __init__(self, fs=16000, n_fft=1024, hop_length=256, f0min=40, f0max=400,
                 use_token_averaged_f0=True, use_continuous_f0=False,
                 use_log_f0=False, reduction_factor=1):
        self.fs = fs
        self.n_fft = n_fft
        self.hop_length = hop_length
        self.frame_period = 1000 * hop_length / fs
        self.f0min = f0min
        self.f0max = f0max
        self.use_token_averaged_f0 = use_token_averaged_f0
        self.use_continuous_f0 = use_continuous_f0
        self.use_log_f0 = use_log_f0
        if use_token_averaged_f0:
            assert reduction_factor >= 1
        self.reduction_factor = reduction_factor

    def output_size(self):
        return 1

    def __call__(self, input_waves, input_waves_lengths=None, feats_lengths=None,
                 durations=None, durations_lengths=None, norm_by_average=True, text=None):
        B, L = input_waves.shape
        if input_waves_lengths is None:
            input_waves_lengths = [L] * B
        lengths = [int(v) for v in input_waves_lengths]

        # One batched pallas_call for the whole batch (frames are independent).
        f0_list = _yin_estimate_batch(
            [input_waves[b, :lengths[b]] for b in range(B)],
            fs=self.fs, f0min=self.f0min, f0max=self.f0max, hop=self.hop_length)

        pitches = []
        for b in range(B):
            f0 = f0_list[b]
            num_frames = math.ceil(lengths[b] / self.hop_length)
            f0 = _adjust_num_frames(f0, num_frames)
            if feats_lengths is not None:
                f0 = _adjust_num_frames(f0, int(feats_lengths[b]))
            pitches.append(f0)

        if self.use_token_averaged_f0:
            pitches = [_average_by_duration(p, d, self.reduction_factor)
                       for p, d in zip(pitches, durations)]
            pitch_lengths = jnp.asarray(durations_lengths, jnp.int32)
        else:
            pitch_lengths = jnp.asarray([int(p.shape[0]) for p in pitches], jnp.int32)

        maxlen = max(int(p.shape[0]) for p in pitches)
        pitch = jnp.stack([jnp.pad(p, (0, maxlen - int(p.shape[0]))) for p in pitches])

        if norm_by_average:
            p0 = pitch[0]
            nz = p0 != 0.0
            average = jnp.sum(jnp.where(nz, p0, 0.0)) / jnp.sum(nz)
            pitch = pitch / average

        return pitch[..., None], pitch_lengths


# --------------------------------------------------------------------------- #
if __name__ == "__main__":
    # Small synthetic config: fs=8000, hop=64, f0 in [125, 500] Hz
    #   -> tau_min=16, tau_max=64, frame_length=128
    fs, hop, f0min, f0max = 8000, 64, 125, 500
    B, L = 2, 512

    key = jax.random.PRNGKey(0)
    t = jnp.arange(L, dtype=jnp.float32) / fs
    freqs = [250.0, 200.0]
    waves = jnp.stack([jnp.sin(2 * jnp.pi * f * t) for f in freqs])
    waves = waves + 0.01 * jax.random.normal(key, waves.shape, dtype=jnp.float32)

    # Per-token durations (frames); each sums to ceil(L / hop) == 8.
    durations = [[2, 3, 3], [1, 2, 2, 3]]
    durations_lengths = [3, 4]

    yin = YinPallas(fs=fs, hop_length=hop, f0min=f0min, f0max=f0max,
                    use_token_averaged_f0=True, reduction_factor=1)
    pitch, pitch_lengths = yin(waves, durations=durations,
                               durations_lengths=durations_lengths,
                               norm_by_average=True)
    jax.block_until_ready(pitch)
    assert pitch.shape == (2, 4, 1) and pitch_lengths.shape == (2,)
    print("KERNEL_OK")
</pallas_src>

<mosaic_0001>
module attributes {stable_mosaic.version = 11 : i64} {
  func.func @_yin_kernel(%arg0: i32, %arg1: memref<136x128xf32, #tpu.memory_space<vmem>>, %arg2: memref<8x128xf32, #tpu.memory_space<vmem>>, %arg3: memref<64x128xf32, #tpu.memory_space<vmem>>) attributes {dimension_semantics = [#tpu.dimension_semantics<parallel>], iteration_bounds = array<i64: 1>, scalar_prefetch = 0 : i64, scratch_operands = 1 : i64, tpu.core_type = #tpu.core_type<tc>, window_params = [{transform_indices = @transform_0, window_bounds = array<i64: 136, 128>}, {transform_indices = @transform_1, window_bounds = array<i64: 8, 128>}]} {
    %cst = arith.constant 0.000000e+00 : f32
    %0 = vector.broadcast %cst : f32 to vector<64x128xf32>
    %c0 = arith.constant 0 : index
    %c0_0 = arith.constant 0 : index
    %1 = vector.load %arg3[%c0, %c0_0] : memref<64x128xf32, #tpu.memory_space<vmem>>, vector<64x128xf32>
    tpu.vector_store %arg3[%c0, %c0_0], %0 {strides = array<i32>} : memref<64x128xf32, #tpu.memory_space<vmem>>, vector<64x128xf32>,
    %c0_i32 = arith.constant 0 : i32
    %c8_i32 = arith.constant 8 : i32
    %2 = arith.addi %c0_i32, %c8_i32 : i32
    %c1_i32 = arith.constant 1 : i32
    scf.for %arg4 = %c0_i32 to %2 step %c1_i32  : i32 {
      %c8_i32_25 = arith.constant 8 : i32
      %73 = arith.muli %arg4, %c8_i32_25 : i32
      %74 = tpu.assume_multiple %73, 8 : i32
      %75 = arith.index_cast %74 : i32 to index
      %c0_26 = arith.constant 0 : index
      %76 = vector.load %arg1[%75, %c0_26] : memref<136x128xf32, #tpu.memory_space<vmem>>, vector<72x128xf32>
      %c0_27 = arith.constant 0 : index
      %c0_28 = arith.constant 0 : index
      %77 = vector.load %arg3[%c0_27, %c0_28] : memref<64x128xf32, #tpu.memory_space<vmem>>, vector<64x128xf32>
      %78 = vector.extract_strided_slice %76 {offsets = [0, 0], sizes = [1, 128], strides = [1, 1]} : vector<72x128xf32> to vector<1x128xf32>
      %79 = vector.extract_strided_slice %76 {offsets = [0, 0], sizes = [64, 128], strides = [1, 1]} : vector<72x128xf32> to vector<64x128xf32>
      %80 = vector.broadcast %78 : vector<1x128xf32> to vector<64x128xf32>
      %81 = arith.subf %79, %80 : vector<64x128xf32>
      %82 = arith.mulf %81, %81 : vector<64x128xf32>
      %83 = vector.extract_strided_slice %76 {offsets = [1, 0], sizes = [1, 128], strides = [1, 1]} : vector<72x128xf32> to vector<1x128xf32>
      %84 = vector.extract_strided_slice %76 {offsets = [1, 0], sizes = [64, 128], strides = [1, 1]} : vector<72x128xf32> to vector<64x128xf32>
      %85 = vector.broadcast %83 : vector<1x128xf32> to vector<64x128xf32>
      %86 = arith.subf %84, %85 : vector<64x128xf32>
      %87 = arith.mulf %86, %86 : vector<64x128xf32>
      %88 = arith.addf %82, %87 : vector<64x128xf32>
      %89 = vector.extract_strided_slice %76 {offsets = [2, 0], sizes = [1, 128], strides = [1, 1]} : vector<72x128xf32> to vector<1x128xf32>
      %90 = vector.extract_strided_slice %76 {offsets = [2, 0], sizes = [64, 128], strides = [1, 1]} : vector<72x128xf32> to vector<64x128xf32>
      %91 = vector.broadcast %89 : vector<1x128xf32> to vector<64x128xf32>
      %92 = arith.subf %90, %91 : vector<64x128xf32>
      %93 = arith.mulf %92, %92 : vector<64x128xf32>
      %94 = arith.addf %88, %93 : vector<64x128xf32>
      %95 = vector.extract_strided_slice %76 {offsets = [3, 0], sizes = [1, 128], strides = [1, 1]} : vector<72x128xf32> to vector<1x128xf32>
      %96 = vector.extract_strided_slice %76 {offsets = [3, 0], sizes = [64, 128], strides = [1, 1]} : vector<72x128xf32> to vector<64x128xf32>
      %97 = vector.broadcast %95 : vector<1x128xf32> to vector<64x128xf32>
      %98 = arith.subf %96, %97 : vector<64x128xf32>
      %99 = arith.mulf %98, %98 : vector<64x128xf32>
      %100 = arith.addf %94, %99 : vector<64x128xf32>
      %101 = vector.extract_strided_slice %76 {offsets = [4, 0], sizes = [1, 128], strides = [1, 1]} : vector<72x128xf32> to vector<1x128xf32>
      %102 = vector.extract_strided_slice %76 {offsets = [4, 0], sizes = [64, 128], strides = [1, 1]} : vector<72x128xf32> to vector<64x128xf32>
      %103 = vector.broadcast %101 : vector<1x128xf32> to vector<64x128xf32>
      %104 = arith.subf %102, %103 : vector<64x128xf32>
      %105 = arith.mulf %104, %104 : vector<64x128xf32>
      %106 = arith.addf %100, %105 : vector<64x128xf32>
      %107 = vector.extract_strided_slice %76 {offsets = [5, 0], sizes = [1, 128], strides = [1, 1]} : vector<72x128xf32> to vector<1x128xf32>
      %108 = vector.extract_strided_slice %76 {offsets = [5, 0], sizes = [64, 128], strides = [1, 1]} : vector<72x128xf32> to vector<64x128xf32>
      %109 = vector.broadcast %107 : vector<1x128xf32> to vector<64x128xf32>
      %110 = arith.subf %108, %109 : vector<64x128xf32>
      %111 = arith.mulf %110, %110 : vector<64x128xf32>
      %112 = arith.addf %106, %111 : vector<64x128xf32>
      %113 = vector.extract_strided_slice %76 {offsets = [6, 0], sizes = [1, 128], strides = [1, 1]} : vector<72x128xf32> to vector<1x128xf32>
      %114 = vector.extract_strided_slice %76 {offsets = [6, 0], sizes = [64, 128], strides = [1, 1]} : vector<72x128xf32> to vector<64x128xf32>
      %115 = vector.broadcast %113 : vector<1x128xf32> to vector<64x128xf32>
      %116 = arith.subf %114, %115 : vector<64x128xf32>
      %117 = arith.mulf %116, %116 : vector<64x128xf32>
      %118 = arith.addf %112, %117 : vector<64x128xf32>
      %119 = vector.extract_strided_slice %76 {offsets = [7, 0], sizes = [1, 128], strides = [1, 1]} : vector<72x128xf32> to vector<1x128xf32>
      %120 = vector.extract_strided_slice %76 {offsets = [7, 0], sizes = [64, 128], strides = [1, 1]} : vector<72x128xf32> to vector<64x128xf32>
      %121 = vector.broadcast %119 : vector<1x128xf32> to vector<64x128xf32>
      %122 = arith.subf %120, %121 : vector<64x128xf32>
      %123 = arith.mulf %122, %122 : vector<64x128xf32>
      %124 = arith.addf %118, %123 : vector<64x128xf32>
      %125 = arith.addf %77, %124 : vector<64x128xf32>
      %c0_29 = arith.constant 0 : index
      %c0_30 = arith.constant 0 : index
      %126 = vector.load %arg3[%c0_29, %c0_30] : memref<64x128xf32, #tpu.memory_space<vmem>>, vector<64x128xf32>
      tpu.vector_store %arg3[%c0_29, %c0_30], %125 {strides = array<i32>} : memref<64x128xf32, #tpu.memory_space<vmem>>, vector<64x128xf32>,
    }
    %c8_i32_1 = arith.constant 8 : i32
    %c0_2 = arith.constant 0 : index
    %c0_3 = arith.constant 0 : index
    %3 = vector.load %arg3[%c0_2, %c0_3] : memref<64x128xf32, #tpu.memory_space<vmem>>, vector<64x128xf32>
    %4 = tpu.iota {dimensions = array<i32: 0>} : vector<64x128xi32>
    %5 = arith.sitofp %4 : vector<64x128xi32> to vector<64x128xf32>
    %6 = tpu.iota {dimensions = array<i32: 0>} : vector<64x64xi32>
    %7 = tpu.iota {dimensions = array<i32: 1>} : vector<64x64xi32>
    %c1_i32_4 = arith.constant 1 : i32
    %8 = vector.broadcast %c1_i32_4 : i32 to vector<64x64xi32>
    %9 = arith.cmpi sge, %7, %8 : vector<64x64xi32>
    %10 = arith.cmpi sle, %7, %6 : vector<64x64xi32>
    %11 = arith.andi %9, %10 : vector<64x64xi1>
    %12 = arith.extui %11 : vector<64x64xi1> to vector<64x64xi32>
    %13 = arith.sitofp %12 : vector<64x64xi32> to vector<64x64xf32>
    %cst_5 = arith.constant dense<0.000000e+00> : vector<64x128xf32>
    %14 = tpu.matmul %13, %3, %cst_5 {dimension_numbers = #tpu.dot_dimension_numbers<[1], [0], [0], [1], [0, 0, 1, 1], [], []>} : vector<64x64xf32>, vector<64x128xf32>, vector<64x128xf32> -> vector<64x128xf32>
    %15 = arith.mulf %3, %5 : vector<64x128xf32>
    %cst_6 = arith.constant 9.99999974E-6 : f32
    %16 = vector.broadcast %cst_6 : f32 to vector<64x128xf32>
    %17 = arith.maximumf %14, %16 : vector<64x128xf32>
    %18 = arith.divf %15, %17 : vector<64x128xf32>
    %c17_i32 = arith.constant 17 : i32
    %19 = vector.broadcast %c17_i32 : i32 to vector<64x128xi32>
    %20 = arith.subi %4, %19 : vector<64x128xi32>
    %c17_i32_7 = arith.constant 17 : i32
    %21 = vector.broadcast %c17_i32_7 : i32 to vector<64x128xi32>
    %22 = arith.cmpi sge, %4, %21 : vector<64x128xi32>
    %c63_i32 = arith.constant 63 : i32
    %23 = vector.broadcast %c63_i32 : i32 to vector<64x128xi32>
    %24 = arith.cmpi sle, %4, %23 : vector<64x128xi32>
    %25 = arith.andi %22, %24 : vector<64x128xi1>
    %cst_8 = arith.constant 1.000000e-01 : f32
    %26 = vector.broadcast %cst_8 : f32 to vector<64x128xf32>
    %27 = arith.cmpf olt, %18, %26 : vector<64x128xf32>
    %28 = arith.andi %25, %27 : vector<64x128xi1>
    %c47_i32 = arith.constant 47 : i32
    %29 = vector.broadcast %c47_i32 : i32 to vector<64x128xi32>
    %30 = arith.select %28, %20, %29 : vector<64x128xi1>, vector<64x128xi32>
    %cst_9 = arith.constant dense<2147483647> : vector<128xi32>
    %31 = vector.multi_reduction <minsi>, %30, %cst_9 [0] : vector<64x128xi32> to vector<128xi32>
    %32 = vector.shape_cast %31 : vector<128xi32> to vector<1x128xi32>
    %c0_i32_10 = arith.constant 0 : i32
    %33 = vector.broadcast %c0_i32_10 : i32 to vector<1x128xi32>
    %34 = arith.cmpi sgt, %32, %33 : vector<1x128xi32>
    %c47_i32_11 = arith.constant 47 : i32
    %35 = vector.broadcast %c47_i32_11 : i32 to vector<1x128xi32>
    %36 = arith.cmpi slt, %32, %35 : vector<1x128xi32>
    %37 = arith.andi %34, %36 : vector<1x128xi1>
    %c64_i32 = arith.constant 64 : i32
    %38 = vector.broadcast %c64_i32 : i32 to vector<1x128xi32>
    %39 = arith.select %37, %32, %38 : vector<1x128xi1>, vector<1x128xi32>
    %40 = vector.broadcast %39 : vector<1x128xi32> to vector<64x128xi32>
    %41 = arith.cmpi sge, %20, %40 : vector<64x128xi32>
    %42 = vector.extract_strided_slice %18 {offsets = [1, 0], sizes = [63, 128], strides = [1, 1]} : vector<64x128xf32> to vector<63x128xf32>
    %cst_12 = arith.constant 0.000000e+00 : f32
    %43 = vector.broadcast %cst_12 : f32 to vector<1x128xf32>
    %44 = tpu.concatenate %42, %43 in 0 : vector<63x128xf32>, vector<1x128xf32> -> vector<64x128xf32>
    %45 = arith.subf %44, %18 : vector<64x128xf32>
    %cst_13 = arith.constant 0.000000e+00 : f32
    %46 = vector.broadcast %cst_13 : f32 to vector<64x128xf32>
    %47 = arith.cmpf oge, %45, %46 : vector<64x128xf32>
    %c63_i32_14 = arith.constant 63 : i32
    %48 = vector.broadcast %c63_i32_14 : i32 to vector<64x128xi32>
    %49 = arith.cmpi eq, %4, %48 : vector<64x128xi32>
    %50 = arith.ori %47, %49 : vector<64x128xi1>
    %51 = arith.andi %25, %41 : vector<64x128xi1>
    %52 = arith.andi %51, %50 : vector<64x128xi1>
    %c47_i32_15 = arith.constant 47 : i32
    %53 = vector.broadcast %c47_i32_15 : i32 to vector<64x128xi32>
    %54 = arith.select %52, %20, %53 : vector<64x128xi1>, vector<64x128xi32>
    %cst_16 = arith.constant dense<2147483647> : vector<128xi32>
    %55 = vector.multi_reduction <minsi>, %54, %cst_16 [0] : vector<64x128xi32> to vector<128xi32>
    %56 = vector.shape_cast %55 : vector<128xi32> to vector<1x128xi32>
    %c47_i32_17 = arith.constant 47 : i32
    %57 = vector.broadcast %c47_i32_17 : i32 to vector<1x128xi32>
    %58 = arith.cmpi slt, %56, %57 : vector<1x128xi32>
    %c0_i32_18 = arith.constant 0 : i32
    %59 = vector.broadcast %c0_i32_18 : i32 to vector<1x128xi32>
    %60 = arith.select %58, %56, %59 : vector<1x128xi1>, vector<1x128xi32>
    %c0_i32_19 = arith.constant 0 : i32
    %61 = vector.broadcast %c0_i32_19 : i32 to vector<1x128xi32>
    %62 = arith.cmpi sgt, %60, %61 : vector<1x128xi32>
    %c17_i32_20 = arith.constant 17 : i32
    %63 = vector.broadcast %c17_i32_20 : i32 to vector<1x128xi32>
    %64 = arith.addi %60, %63 : vector<1x128xi32>
    %65 = arith.sitofp %64 : vector<1x128xi32> to vector<1x128xf32>
    %cst_21 = arith.constant 8.000000e+03 : f32
    %66 = vector.broadcast %cst_21 : f32 to vector<1x128xf32>
    %67 = arith.divf %66, %65 : vector<1x128xf32>
    %cst_22 = arith.constant 0.000000e+00 : f32
    %68 = vector.broadcast %cst_22 : f32 to vector<1x128xf32>
    %69 = arith.select %62, %67, %68 : vector<1x128xi1>, vector<1x128xf32>
    %70 = vector.shape_cast %69 : vector<1x128xf32> to vector<1x128xf32>
    %71 = vector.broadcast %70 : vector<1x128xf32> to vector<8x128xf32>
    %c0_23 = arith.constant 0 : index
    %c0_24 = arith.constant 0 : index
    %72 = vector.load %arg2[%c0_23, %c0_24] : memref<8x128xf32, #tpu.memory_space<vmem>>, vector<8x128xf32>
    tpu.vector_store %arg2[%c0_23, %c0_24], %71 {strides = array<i32>} : memref<8x128xf32, #tpu.memory_space<vmem>>, vector<8x128xf32>,
    return
  }
  func.func @transform_0(%arg0: i32) -> (i32, i32) {
    %c0_i32 = arith.constant 0 : i32
    %c0_i32_0 = arith.constant 0 : i32
    return %c0_i32, %arg0 : i32, i32
  }
  func.func @transform_1(%arg0: i32) -> (i32, i32) {
    %c0_i32 = arith.constant 0 : i32
    %c0_i32_0 = arith.constant 0 : i32
    return %c0_i32, %arg0 : i32, i32
  }
}

</mosaic_0001>

<llo_original>
// kernel: tpu_custom_call.1
$region0: #{tpu_custom_call.1}
  #allocation0 [shape = 'u32[]', space=smem, size = 0x4, offset = 0x4, fixed_abs, tag = 'smem constant byte address 0x4 - core index']
  #allocation1 [shape = 'u32[144,128]{1,0:T(1,128)}', space=vmem, size = 0x12000, scoped, tag = 'internal scratch']
  #allocation2 [shape = 'f32[64,128]{1,0:T(8,128)}', space=vmem, size = 0x8000, scoped, tag = 'scratch operand']
  %s0 = inlined_call_operand.hbm [shape: f32[136,128], index: 0, kind: input, shape index: {}]
  %s1 = inlined_call_operand.hbm [shape: f32[8,128], index: 1, kind: output, shape index: {}]
  %s2 = sld [smem:[#allocation0]]
  $region25: #{tpu_custom_call.1} parent=0
    _
  %s4 = ssub.s32 1, %s2
  %s5 = scalar_select 0, %s4, %s2
  $region1: #{tpu_custom_call.1} parent=0
    #allocation3 [shape = 'u8[69632]{0}', space=vmem, size = 0x11000, scoped, tag = 'input window, operand 0, single buffered']
    #allocation4 [shape = 's32[1]{0}', space=sflag, size = 0x4, scoped, tag = 'scoped memory for tpu_custom_call.1']
    #allocation5 [shape = 's32[1]{0}', space=sflag, size = 0x4, scoped, tag = 'scoped memory for tpu_custom_call.1']
    #allocation6 [shape = 'u8[4096]{0}', space=vmem, size = 0x1000, scoped, tag = 'output window, operand 0, single buffered']
    %6 = vsyncpa [#allocation4], 0
    %7 = vsyncpa [#allocation5], 0
    // Predicated region
    $region2: #{tpu_custom_call.1} parent=1 // pred_check
      _
    $region3: #{tpu_custom_call.1} parent=1 // pred_check_branch
      %9 = sbr.rel (0) target = $region5
    $region4: #{tpu_custom_call.1} parent=1 // pred_region
      %s11 = ssub.s32 2176, 2176
      %12 = vsyncadd [#allocation4], %s11
      %s13 = sshll.u32 [#allocation3], 4
      %s14 = int_to_ptr.vmem [resolvable:$true] %s13
      %19 = dma.hbm_to_vmem [thread:$0]  %s0, 2176, %s14, [#allocation4], 128, 128, 8
    $region5: #{tpu_custom_call.1} parent=1 // pred_fallthru
      _
    // Predicated region
    $region6: #{tpu_custom_call.1} parent=1 // pred_check
      _
    $region7: #{tpu_custom_call.1} parent=1 // pred_check_branch
      %21 = sbr.rel (0) target = $region9
    $region8: #{tpu_custom_call.1} parent=1 // pred_region
      %22 = dma.done [#allocation4], 2176
    $region9: #{tpu_custom_call.1} parent=1 // pred_fallthru
      _
    %23 = vst [vmem:[#allocation2] sm:$0xff] 0.0
    %24 = vst [vmem:[#allocation2 + $0x8] sm:$0xff] 0.0
    %25 = vst [vmem:[#allocation2 + $0x10] sm:$0xff] 0.0
    %26 = vst [vmem:[#allocation2 + $0x18] sm:$0xff] 0.0
    %27 = vst [vmem:[#allocation2 + $0x20] sm:$0xff] 0.0
    %28 = vst [vmem:[#allocation2 + $0x28] sm:$0xff] 0.0
    %29 = vst [vmem:[#allocation2 + $0x30] sm:$0xff] 0.0
    %30 = vst [vmem:[#allocation2 + $0x38] sm:$0xff] 0.0
    loop: start=0, step=1, limit=8
    $region10: #{tpu_custom_call.1} parent=1 // loop_pre_header
      _
    $region11: #{tpu_custom_call.1} parent=1 // loop_header
      %s32 = sphi 0, %s36
      %p33 = scmp.ge.s32.totalorder %s32, 8
    $region12: #{tpu_custom_call.1} parent=1 // loop_header_branch
      %35 = sbr.rel (%p33) target = $region16
    $region13: #{tpu_custom_call.1} parent=1 // loop_body
      %s37 = smul.u32 %s32, 8
      %s38 = scalar_lea.vmem [#allocation3], %s37
      %v39 = vld [vmem:[%s38] sm:$0xff]
      %v40 = vld [vmem:[%s38 + $0x8] sm:$0xff]
      %v41 = vld [vmem:[%s38 + $0x10] sm:$0xff]
      %v42 = vld [vmem:[%s38 + $0x18] sm:$0xff]
      %v43 = vld [vmem:[%s38 + $0x20] sm:$0xff]
      %v44 = vld [vmem:[%s38 + $0x28] sm:$0xff]
      %v45 = vld [vmem:[%s38 + $0x30] sm:$0xff]
      %v46 = vld [vmem:[%s38 + $0x38] sm:$0xff]
      %v47 = vld [vmem:[%s38 + $0x40] sm:$0xff]
      %v48 = vld [vmem:[#allocation2] sm:$0xff]
      %v49 = vld [vmem:[#allocation2 + $0x8] sm:$0xff]
      %v50 = vld [vmem:[#allocation2 + $0x10] sm:$0xff]
      %v51 = vld [vmem:[#allocation2 + $0x18] sm:$0xff]
      %v52 = vld [vmem:[#allocation2 + $0x20] sm:$0xff]
      %v53 = vld [vmem:[#allocation2 + $0x28] sm:$0xff]
      %v54 = vld [vmem:[#allocation2 + $0x30] sm:$0xff]
      %v55 = vld [vmem:[#allocation2 + $0x38] sm:$0xff]
      %v56 = vlaneseq
      %v57 = vshrl.u32 %v56, 7
      %v58 = vsub.s32 0, %v57
      %v59 = vrot.slane %v39, %v58
      %v60 = vsub.f32 %v39, %v59
      %v61 = vsub.f32 %v40, %v59
      %v62 = vsub.f32 %v41, %v59
      %v63 = vsub.f32 %v42, %v59
      %v64 = vsub.f32 %v43, %v59
      %v65 = vsub.f32 %v44, %v59
      %v66 = vsub.f32 %v45, %v59
      %v67 = vsub.f32 %v46, %v59
      %v68 = vmul.f32 %v60, %v60
      %v69 = vmul.f32 %v61, %v61
      %v70 = vmul.f32 %v62, %v62
      %v71 = vmul.f32 %v63, %v63
      %v72 = vmul.f32 %v64, %v64
      %v73 = vmul.f32 %v65, %v65
      %v74 = vmul.f32 %v66, %v66
      %v75 = vmul.f32 %v67, %v67
      %v76 = vlaneseq
      %v77 = vshrl.u32 %v76, 7
      %v78 = vsub.s32 1, %v77
      %v79 = vrot.slane %v39, %v78
      %v80 = vsub.f32 %v39, %v79
      %v81 = vsub.f32 %v40, %v79
      %v82 = vsub.f32 %v41, %v79
      %v83 = vsub.f32 %v42, %v79
      %v84 = vsub.f32 %v43, %v79
      %v85 = vsub.f32 %v44, %v79
      %v86 = vsub.f32 %v45, %v79
      %v87 = vsub.f32 %v46, %v79
      %v88 = vsub.f32 %v47, %v79
      %v89 = vmul.f32 %v80, %v80
      %v90 = vmul.f32 %v81, %v81
      %v91 = vmul.f32 %v82, %v82
      %v92 = vmul.f32 %v83, %v83
      %v93 = vmul.f32 %v84, %v84
      %v94 = vmul.f32 %v85, %v85
      %v95 = vmul.f32 %v86, %v86
      %v96 = vmul.f32 %v87, %v87
      %v97 = vmul.f32 %v88, %v88
      %vm107 = vcmask 1046528
      %v108 = vrot.slane %v89, 1
      %v109 = vrot.slane %v90, 1
      %v110 = vsel %vm107, %v108, %v109
      %v111 = vrot.slane %v91, 1
      %v112 = vsel %vm107, %v109, %v111
      %v113 = vrot.slane %v92, 1
      %v114 = vsel %vm107, %v111, %v113
      %v115 = vrot.slane %v93, 1
      %v116 = vsel %vm107, %v113, %v115
      %v117 = vrot.slane %v94, 1
      %v118 = vsel %vm107, %v115, %v117
      %v119 = vrot.slane %v95, 1
      %v120 = vsel %vm107, %v117, %v119
      %v121 = vrot.slane %v96, 1
      %v122 = vsel %vm107, %v119, %v121
      %v123 = vrot.slane %v97, 1
      %v124 = vsel %vm107, %v121, %v123
      %v133 = vadd.f32 %v68, %v110
      %v134 = vadd.f32 %v69, %v112
      %v135 = vadd.f32 %v70, %v114
      %v136 = vadd.f32 %v71, %v116
      %v137 = vadd.f32 %v72, %v118
      %v138 = vadd.f32 %v73, %v120
      %v139 = vadd.f32 %v74, %v122
      %v140 = vadd.f32 %v75, %v124
      %v141 = vlaneseq
      %v142 = vshrl.u32 %v141, 7
      %v143 = vsub.s32 2, %v142
      %v144 = vrot.slane %v39, %v143
      %v145 = vsub.f32 %v39, %v144
      %v146 = vsub.f32 %v40, %v144
      %v147 = vsub.f32 %v41, %v144
      %v148 = vsub.f32 %v42, %v144
      %v149 = vsub.f32 %v43, %v144
      %v150 = vsub.f32 %v44, %v144
      %v151 = vsub.f32 %v45, %v144
      %v152 = vsub.f32 %v46, %v144
      %v153 = vsub.f32 %v47, %v144
      %v154 = vmul.f32 %v145, %v145
      %v155 = vmul.f32 %v146, %v146
      %v156 = vmul.f32 %v147, %v147
      %v157 = vmul.f32 %v148, %v148
      %v158 = vmul.f32 %v149, %v149
      %v159 = vmul.f32 %v150, %v150
      %v160 = vmul.f32 %v151, %v151
      %v161 = vmul.f32 %v152, %v152
      %v162 = vmul.f32 %v153, %v153
      %vm172 = vcmask 1045504
      %v173 = vrot.slane %v154, 2
      %v174 = vrot.slane %v155, 2
      %v175 = vsel %vm172, %v173, %v174
      %v176 = vrot.slane %v156, 2
      %v177 = vsel %vm172, %v174, %v176
      %v178 = vrot.slane %v157, 2
      %v179 = vsel %vm172, %v176, %v178
      %v180 = vrot.slane %v158, 2
      %v181 = vsel %vm172, %v178, %v180
      %v182 = vrot.slane %v159, 2
      %v183 = vsel %vm172, %v180, %v182
      %v184 = vrot.slane %v160, 2
      %v185 = vsel %vm172, %v182, %v184
      %v186 = vrot.slane %v161, 2
      %v187 = vsel %vm172, %v184, %v186
      %v188 = vrot.slane %v162, 2
      %v189 = vsel %vm172, %v186, %v188
      %v198 = vadd.f32 %v133, %v175
      %v199 = vadd.f32 %v134, %v177
      %v200 = vadd.f32 %v135, %v179
      %v201 = vadd.f32 %v136, %v181
      %v202 = vadd.f32 %v137, %v183
      %v203 = vadd.f32 %v138, %v185
      %v204 = vadd.f32 %v139, %v187
      %v205 = vadd.f32 %v140, %v189
      %v206 = vlaneseq
      %v207 = vshrl.u32 %v206, 7
      %v208 = vsub.s32 3, %v207
      %v209 = vrot.slane %v39, %v208
      %v210 = vsub.f32 %v39, %v209
      %v211 = vsub.f32 %v40, %v209
      %v212 = vsub.f32 %v41, %v209
      %v213 = vsub.f32 %v42, %v209
      %v214 = vsub.f32 %v43, %v209
      %v215 = vsub.f32 %v44, %v209
      %v216 = vsub.f32 %v45, %v209
      %v217 = vsub.f32 %v46, %v209
      %v218 = vsub.f32 %v47, %v209
      %v219 = vmul.f32 %v210, %v210
      %v220 = vmul.f32 %v211, %v211
      %v221 = vmul.f32 %v212, %v212
      %v222 = vmul.f32 %v213, %v213
      %v223 = vmul.f32 %v214, %v214
      %v224 = vmul.f32 %v215, %v215
      %v225 = vmul.f32 %v216, %v216
      %v226 = vmul.f32 %v217, %v217
      %v227 = vmul.f32 %v218, %v218
      %vm237 = vcmask 1044480
      %v238 = vrot.slane %v219, 3
      %v239 = vrot.slane %v220, 3
      %v240 = vsel %vm237, %v238, %v239
      %v241 = vrot.slane %v221, 3
      %v242 = vsel %vm237, %v239, %v241
      %v243 = vrot.slane %v222, 3
      %v244 = vsel %vm237, %v241, %v243
      %v245 = vrot.slane %v223, 3
      %v246 = vsel %vm237, %v243, %v245
      %v247 = vrot.slane %v224, 3
      %v248 = vsel %vm237, %v245, %v247
      %v249 = vrot.slane %v225, 3
      %v250 = vsel %vm237, %v247, %v249
      %v251 = vrot.slane %v226, 3
      %v252 = vsel %vm237, %v249, %v251
      %v253 = vrot.slane %v227, 3
      %v254 = vsel %vm237, %v251, %v253
      %v263 = vadd.f32 %v198, %v240
      %v264 = vadd.f32 %v199, %v242
      %v265 = vadd.f32 %v200, %v244
      %v266 = vadd.f32 %v201, %v246
      %v267 = vadd.f32 %v202, %v248
      %v268 = vadd.f32 %v203, %v250
      %v269 = vadd.f32 %v204, %v252
      %v270 = vadd.f32 %v205, %v254
      %v271 = vlaneseq
      %v272 = vshrl.u32 %v271, 7
      %v273 = vsub.s32 4, %v272
      %v274 = vrot.slane %v39, %v273
      %v275 = vsub.f32 %v39, %v274
      %v276 = vsub.f32 %v40, %v274
      %v277 = vsub.f32 %v41, %v274
      %v278 = vsub.f32 %v42, %v274
      %v279 = vsub.f32 %v43, %v274
      %v280 = vsub.f32 %v44, %v274
      %v281 = vsub.f32 %v45, %v274
      %v282 = vsub.f32 %v46, %v274
      %v283 = vsub.f32 %v47, %v274
      %v284 = vmul.f32 %v275, %v275
      %v285 = vmul.f32 %v276, %v276
      %v286 = vmul.f32 %v277, %v277
      %v287 = vmul.f32 %v278, %v278
      %v288 = vmul.f32 %v279, %v279
      %v289 = vmul.f32 %v280, %v280
      %v290 = vmul.f32 %v281, %v281
      %v291 = vmul.f32 %v282, %v282
      %v292 = vmul.f32 %v283, %v283
      %vm302 = vcmask 1043456
      %v303 = vrot.slane %v284, 4
      %v304 = vrot.slane %v285, 4
      %v305 = vsel %vm302, %v303, %v304
      %v306 = vrot.slane %v286, 4
      %v307 = vsel %vm302, %v304, %v306
      %v308 = vrot.slane %v287, 4
      %v309 = vsel %vm302, %v306, %v308
      %v310 = vrot.slane %v288, 4
      %v311 = vsel %vm302, %v308, %v310
      %v312 = vrot.slane %v289, 4
      %v313 = vsel %vm302, %v310, %v312
      %v314 = vrot.slane %v290, 4
      %v315 = vsel %vm302, %v312, %v314
      %v316 = vrot.slane %v291, 4
      %v317 = vsel %vm302, %v314, %v316
      %v318 = vrot.slane %v292, 4
      %v319 = vsel %vm302, %v316, %v318
      %v328 = vadd.f32 %v263, %v305
      %v329 = vadd.f32 %v264, %v307
      %v330 = vadd.f32 %v265, %v309
      %v331 = vadd.f32 %v266, %v311
      %v332 = vadd.f32 %v267, %v313
      %v333 = vadd.f32 %v268, %v315
      %v334 = vadd.f32 %v269, %v317
      %v335 = vadd.f32 %v270, %v319
      %v336 = vlaneseq
      %v337 = vshrl.u32 %v336, 7
      %v338 = vsub.s32 5, %v337
      %v339 = vrot.slane %v39, %v338
      %v340 = vsub.f32 %v39, %v339
      %v341 = vsub.f32 %v40, %v339
      %v342 = vsub.f32 %v41, %v339
      %v343 = vsub.f32 %v42, %v339
      %v344 = vsub.f32 %v43, %v339
      %v345 = vsub.f32 %v44, %v339
      %v346 = vsub.f32 %v45, %v339
      %v347 = vsub.f32 %v46, %v339
      %v348 = vsub.f32 %v47, %v339
      %v349 = vmul.f32 %v340, %v340
      %v350 = vmul.f32 %v341, %v341
      %v351 = vmul.f32 %v342, %v342
      %v352 = vmul.f32 %v343, %v343
      %v353 = vmul.f32 %v344, %v344
      %v354 = vmul.f32 %v345, %v345
      %v355 = vmul.f32 %v346, %v346
      %v356 = vmul.f32 %v347, %v347
      %v357 = vmul.f32 %v348, %v348
      %vm367 = vcmask 1042432
      %v368 = vrot.slane %v349, 5
      %v369 = vrot.slane %v350, 5
      %v370 = vsel %vm367, %v368, %v369
      %v371 = vrot.slane %v351, 5
      %v372 = vsel %vm367, %v369, %v371
      %v373 = vrot.slane %v352, 5
      %v374 = vsel %vm367, %v371, %v373
      %v375 = vrot.slane %v353, 5
      %v376 = vsel %vm367, %v373, %v375
      %v377 = vrot.slane %v354, 5
      %v378 = vsel %vm367, %v375, %v377
      %v379 = vrot.slane %v355, 5
      %v380 = vsel %vm367, %v377, %v379
      %v381 = vrot.slane %v356, 5
      %v382 = vsel %vm367, %v379, %v381
      %v383 = vrot.slane %v357, 5
      %v384 = vsel %vm367, %v381, %v383
      %v393 = vadd.f32 %v328, %v370
      %v394 = vadd.f32 %v329, %v372
      %v395 = vadd.f32 %v330, %v374
      %v396 = vadd.f32 %v331, %v376
      %v397 = vadd.f32 %v332, %v378
      %v398 = vadd.f32 %v333, %v380
      %v399 = vadd.f32 %v334, %v382
      %v400 = vadd.f32 %v335, %v384
      %v401 = vlaneseq
      %v402 = vshrl.u32 %v401, 7
      %v403 = vsub.s32 6, %v402
      %v404 = vrot.slane %v39, %v403
      %v405 = vsub.f32 %v39, %v404
      %v406 = vsub.f32 %v40, %v404
      %v407 = vsub.f32 %v41, %v404
      %v408 = vsub.f32 %v42, %v404
      %v409 = vsub.f32 %v43, %v404
      %v410 = vsub.f32 %v44, %v404
      %v411 = vsub.f32 %v45, %v404
      %v412 = vsub.f32 %v46, %v404
      %v413 = vsub.f32 %v47, %v404
      %v414 = vmul.f32 %v405, %v405
      %v415 = vmul.f32 %v406, %v406
      %v416 = vmul.f32 %v407, %v407
      %v417 = vmul.f32 %v408, %v408
      %v418 = vmul.f32 %v409, %v409
      %v419 = vmul.f32 %v410, %v410
      %v420 = vmul.f32 %v411, %v411
      %v421 = vmul.f32 %v412, %v412
      %v422 = vmul.f32 %v413, %v413
      %vm432 = vcmask 1041408
      %v433 = vrot.slane %v414, 6
      %v434 = vrot.slane %v415, 6
      %v435 = vsel %vm432, %v433, %v434
      %v436 = vrot.slane %v416, 6
      %v437 = vsel %vm432, %v434, %v436
      %v438 = vrot.slane %v417, 6
      %v439 = vsel %vm432, %v436, %v438
      %v440 = vrot.slane %v418, 6
      %v441 = vsel %vm432, %v438, %v440
      %v442 = vrot.slane %v419, 6
      %v443 = vsel %vm432, %v440, %v442
      %v444 = vrot.slane %v420, 6
      %v445 = vsel %vm432, %v442, %v444
      %v446 = vrot.slane %v421, 6
      %v447 = vsel %vm432, %v444, %v446
      %v448 = vrot.slane %v422, 6
      %v449 = vsel %vm432, %v446, %v448
      %v458 = vadd.f32 %v393, %v435
      %v459 = vadd.f32 %v394, %v437
      %v460 = vadd.f32 %v395, %v439
      %v461 = vadd.f32 %v396, %v441
      %v462 = vadd.f32 %v397, %v443
      %v463 = vadd.f32 %v398, %v445
      %v464 = vadd.f32 %v399, %v447
      %v465 = vadd.f32 %v400, %v449
      %v466 = vlaneseq
      %v467 = vshrl.u32 %v466, 7
      %v468 = vsub.s32 7, %v467
      %v469 = vrot.slane %v39, %v468
      %v470 = vsub.f32 %v39, %v469
      %v471 = vsub.f32 %v40, %v469
      %v472 = vsub.f32 %v41, %v469
      %v473 = vsub.f32 %v42, %v469
      %v474 = vsub.f32 %v43, %v469
      %v475 = vsub.f32 %v44, %v469
      %v476 = vsub.f32 %v45, %v469
      %v477 = vsub.f32 %v46, %v469
      %v478 = vsub.f32 %v47, %v469
      %v479 = vmul.f32 %v470, %v470
      %v480 = vmul.f32 %v471, %v471
      %v481 = vmul.f32 %v472, %v472
      %v482 = vmul.f32 %v473, %v473
      %v483 = vmul.f32 %v474, %v474
      %v484 = vmul.f32 %v475, %v475
      %v485 = vmul.f32 %v476, %v476
      %v486 = vmul.f32 %v477, %v477
      %v487 = vmul.f32 %v478, %v478
      %vm497 = vcmask 1040384
      %v498 = vrot.slane %v479, 7
      %v499 = vrot.slane %v480, 7
      %v500 = vsel %vm497, %v498, %v499
      %v501 = vrot.slane %v481, 7
      %v502 = vsel %vm497, %v499, %v501
      %v503 = vrot.slane %v482, 7
      %v504 = vsel %vm497, %v501, %v503
      %v505 = vrot.slane %v483, 7
      %v506 = vsel %vm497, %v503, %v505
      %v507 = vrot.slane %v484, 7
      %v508 = vsel %vm497, %v505, %v507
      %v509 = vrot.slane %v485, 7
      %v510 = vsel %vm497, %v507, %v509
      %v511 = vrot.slane %v486, 7
      %v512 = vsel %vm497, %v509, %v511
      %v513 = vrot.slane %v487, 7
      %v514 = vsel %vm497, %v511, %v513
      %v523 = vadd.f32 %v458, %v500
      %v524 = vadd.f32 %v459, %v502
      %v525 = vadd.f32 %v460, %v504
      %v526 = vadd.f32 %v461, %v506
      %v527 = vadd.f32 %v462, %v508
      %v528 = vadd.f32 %v463, %v510
      %v529 = vadd.f32 %v464, %v512
      %v530 = vadd.f32 %v465, %v514
      %v531 = vadd.f32 %v48, %v523
      %v532 = vadd.f32 %v49, %v524
      %v533 = vadd.f32 %v50, %v525
      %v534 = vadd.f32 %v51, %v526
      %v535 = vadd.f32 %v52, %v527
      %v536 = vadd.f32 %v53, %v528
      %v537 = vadd.f32 %v54, %v529
      %v538 = vadd.f32 %v55, %v530
      %539 = vst [vmem:[#allocation2] sm:$0xff] %v531
      %540 = vst [vmem:[#allocation2 + $0x8] sm:$0xff] %v532
      %541 = vst [vmem:[#allocation2 + $0x10] sm:$0xff] %v533
      %542 = vst [vmem:[#allocation2 + $0x18] sm:$0xff] %v534
      %543 = vst [vmem:[#allocation2 + $0x20] sm:$0xff] %v535
      %544 = vst [vmem:[#allocation2 + $0x28] sm:$0xff] %v536
      %545 = vst [vmem:[#allocation2 + $0x30] sm:$0xff] %v537
      %546 = vst [vmem:[#allocation2 + $0x38] sm:$0xff] %v538
    $region14: #{tpu_custom_call.1} parent=1 // loop_footer
      %s36 = sadd.s32 1, %s32
    $region15: #{tpu_custom_call.1} parent=1 // loop_footer_branch
      %31 = sbr.rel target = $region11
    $region16: #{tpu_custom_call.1} parent=1 // loop_exit
      _
    %v547 = vld [vmem:[#allocation2] sm:$0xff]
    %v548 = vld [vmem:[#allocation2 + $0x8] sm:$0xff]
    %v549 = vld [vmem:[#allocation2 + $0x10] sm:$0xff]
    %v550 = vld [vmem:[#allocation2 + $0x18] sm:$0xff]
    %v551 = vld [vmem:[#allocation2 + $0x20] sm:$0xff]
    %v552 = vld [vmem:[#allocation2 + $0x28] sm:$0xff]
    %v553 = vld [vmem:[#allocation2 + $0x30] sm:$0xff]
    %v554 = vld [vmem:[#allocation2 + $0x38] sm:$0xff]
    %v555 = vlaneseq
    %v556 = vshrl.u32 %v555, 7
    %v557 = vadd.s32 %v556, 8
    %v558 = vadd.s32 %v556, 16
    %v559 = vadd.s32 %v556, 24
    %v560 = vadd.s32 %v556, 32
    %v561 = vadd.s32 %v556, 40
    %v562 = vadd.s32 %v556, 48
    %v563 = vadd.s32 %v556, 56
    %v564 = vcvt.s32.f32 %v556
    %v565 = vcvt.s32.f32 %v557
    %v566 = vcvt.s32.f32 %v558
    %v567 = vcvt.s32.f32 %v559
    %v568 = vcvt.s32.f32 %v560
    %v569 = vcvt.s32.f32 %v561
    %v570 = vcvt.s32.f32 %v562
    %v571 = vcvt.s32.f32 %v563
    %v572 = vlaneseq
    %v573 = vand.u32 %v572, 127
    %vm574 = vcmp.ge.s32.totalorder %v573, 1
    %vm575 = vcmp.le.s32.totalorder %v573, %v556
    %vm576 = vcmp.le.s32.totalorder %v573, %v557
    %vm577 = vcmp.le.s32.totalorder %v573, %v558
    %vm578 = vcmp.le.s32.totalorder %v573, %v559
    %vm579 = vcmp.le.s32.totalorder %v573, %v560
    %vm580 = vcmp.le.s32.totalorder %v573, %v561
    %vm581 = vcmp.le.s32.totalorder %v573, %v562
    %vm582 = vcmp.le.s32.totalorder %v573, %v563
    %vm583 = vmand %vm574, %vm575
    %vm584 = vmand %vm574, %vm576
    %vm585 = vmand %vm574, %vm577
    %vm586 = vmand %vm574, %vm578
    %vm587 = vmand %vm574, %vm579
    %vm588 = vmand %vm574, %vm580
    %vm589 = vmand %vm574, %vm581
    %vm590 = vmand %vm574, %vm582
    %v591 = vsel %vm583, 1, 0
    %v592 = vsel %vm584, 1, 0
    %v593 = vsel %vm585, 1, 0
    %v594 = vsel %vm586, 1, 0
    %v595 = vsel %vm587, 1, 0
    %v596 = vsel %vm588, 1, 0
    %v597 = vsel %vm589, 1, 0
    %v598 = vsel %vm590, 1, 0
    %v599 = vcvt.s32.f32 %v591
    %v600 = vcvt.s32.f32 %v592
    %v601 = vcvt.s32.f32 %v593
    %v602 = vcvt.s32.f32 %v594
    %v603 = vcvt.s32.f32 %v595
    %v604 = vcvt.s32.f32 %v596
    %v605 = vcvt.s32.f32 %v597
    %v606 = vcvt.s32.f32 %v598
    %vm607 = vcmask 523264
    %v609 = vsel %vm607, %v599, 0
    %v612 = vsel %vm607, %v600, 0
    %v615 = vsel %vm607, %v601, 0
    %v618 = vsel %vm607, %v602, 0
    %v621 = vsel %vm607, %v603, 0
    %v624 = vsel %vm607, %v604, 0
    %v627 = vsel %vm607, %v605, 0
    %v630 = vsel %vm607, %v606, 0
    %632 = vmatprep.subr.mxu0 0.0
    %633 = vmatpush1.msra.mxu0 0.0
    %634 = vmatprep.subr.mxu0 0.0
    %635 = vmatpush1.msra.mxu0 0.0
    %636 = vmatprep.subr.mxu0 0.0
    %637 = vmatpush1.msra.mxu0 0.0
    %638 = vmatprep.subr.mxu0 0.0
    %639 = vmatpush1.msra.mxu0 0.0
    %640 = vmatprep.subr.mxu0 0.0
    %641 = vmatpush1.msra.mxu0 0.0
    %642 = vmatprep.subr.mxu0 0.0
    %643 = vmatpush1.msra.mxu0 0.0
    %644 = vmatprep.subr.mxu0 0.0
    %645 = vmatpush1.msra.mxu0 0.0
    %646 = vmatprep.subr.mxu0 0.0
    %647 = vmatpush1.msra.mxu0 0.0
    %648 = vmatprep.subr.mxu0 0.0
    %649 = vmatpush1.msra.mxu0 %v554
    %650 = vmatprep.subr.mxu0 0.0
    %651 = vmatpush1.msra.mxu0 %v553
    %652 = vmatprep.subr.mxu0 0.0
    %653 = vmatpush1.msra.mxu0 %v552
    %654 = vmatprep.subr.mxu0 0.0
    %655 = vmatpush1.msra.mxu0 %v551
    %656 = vmatprep.subr.mxu0 0.0
    %657 = vmatpush1.msra.mxu0 %v550
    %658 = vmatprep.subr.mxu0 0.0
    %659 = vmatpush1.msra.mxu0 %v549
    %660 = vmatprep.subr.mxu0 0.0
    %661 = vmatpush1.msra.mxu0 %v548
    %662 = vmatprep.subr.mxu0 0.0
    %663 = vmatpush1.msra.mxu0 %v547
    %664 = vmatprep.subr.mxu0 0.0
    %665 = vmatpush2.msra.mxu0 0.0
    %666 = vmatprep.subr.mxu0 0.0
    %667 = vmatpush2.msra.mxu0 0.0
    %668 = vmatprep.subr.mxu0 0.0
    %669 = vmatpush2.msra.mxu0 0.0
    %670 = vmatprep.subr.mxu0 0.0
    %671 = vmatpush2.msra.mxu0 0.0
    %672 = vmatprep.subr.mxu0 0.0
    %673 = vmatpush2.msra.mxu0 0.0
    %674 = vmatprep.subr.mxu0 0.0
    %675 = vmatpush2.msra.mxu0 0.0
    %676 = vmatprep.subr.mxu0 0.0
    %677 = vmatpush2.msra.mxu0 0.0
    %678 = vmatprep.subr.mxu0 0.0
    %679 = vmatpush2.msra.mxu0 0.0
    %680 = vmatprep.subr.mxu0 0.0
    %681 = vmatpush2.msra.mxu0 0.0
    %682 = vmatprep.subr.mxu0 0.0
    %683 = vmatpush2.msra.mxu0 0.0
    %684 = vmatprep.subr.mxu0 0.0
    %685 = vmatpush2.msra.mxu0 0.0
    %686 = vmatprep.subr.mxu0 0.0
    %687 = vmatpush2.msra.mxu0 0.0
    %688 = vmatprep.subr.mxu0 0.0
    %689 = vmatpush2.msra.mxu0 0.0
    %690 = vmatprep.subr.mxu0 0.0
    %691 = vmatpush2.msra.mxu0 0.0
    %692 = vmatprep.subr.mxu0 0.0
    %693 = vmatpush2.msra.mxu0 0.0
    %694 = vmatprep.subr.mxu0 0.0
    %695 = vmatpush2.msra.mxu0 0.0
    %696 = vmatprep.mubr.f32.mxu0 0.0
    %697 = vmatmul.mubr.f32.gmra.mxu0 %v609
    %v698 = vpop.f32.mrf.mxu0
    %v699 = vadd.f32 0.0, %v698
    %v700 = vpop.f32.mrf.mxu0
    %701 = vmatprep.mubr.f32.mxu0 0.0
    %702 = vmatmul.mubr.f32.gmra.mxu0 %v612
    %v703 = vpop.f32.mrf.mxu0
    %v704 = vadd.f32 0.0, %v703
    %v705 = vpop.f32.mrf.mxu0
    %706 = vmatprep.mubr.f32.mxu0 0.0
    %707 = vmatmul.mubr.f32.gmra.mxu0 %v615
    %v708 = vpop.f32.mrf.mxu0
    %v709 = vadd.f32 0.0, %v708
    %v710 = vpop.f32.mrf.mxu0
    %711 = vmatprep.mubr.f32.mxu0 0.0
    %712 = vmatmul.mubr.f32.gmra.mxu0 %v618
    %v713 = vpop.f32.mrf.mxu0
    %v714 = vadd.f32 0.0, %v713
    %v715 = vpop.f32.mrf.mxu0
    %716 = vmatprep.mubr.f32.mxu0 0.0
    %717 = vmatmul.mubr.f32.gmra.mxu0 %v621
    %v718 = vpop.f32.mrf.mxu0
    %v719 = vadd.f32 0.0, %v718
    %v720 = vpop.f32.mrf.mxu0
    %721 = vmatprep.mubr.f32.mxu0 0.0
    %722 = vmatmul.mubr.f32.gmra.mxu0 %v624
    %v723 = vpop.f32.mrf.mxu0
    %v724 = vadd.f32 0.0, %v723
    %v725 = vpop.f32.mrf.mxu0
    %726 = vmatprep.mubr.f32.mxu0 0.0
    %727 = vmatmul.mubr.f32.gmra.mxu0 %v627
    %v728 = vpop.f32.mrf.mxu0
    %v729 = vadd.f32 0.0, %v728
    %v730 = vpop.f32.mrf.mxu0
    %731 = vmatprep.mubr.f32.mxu0 0.0
    %732 = vmatmul.mubr.f32.gmra.mxu0 %v630
    %v733 = vpop.f32.mrf.mxu0
    %v734 = vadd.f32 0.0, %v733
    %v735 = vpop.f32.mrf.mxu0
    %736 = vdwg.mxu0
    %v737 = vmul.f32 %v547, %v564
    %v738 = vmul.f32 %v548, %v565
    %v739 = vmul.f32 %v549, %v566
    %v740 = vmul.f32 %v550, %v567
    %v741 = vmul.f32 %v551, %v568
    %v742 = vmul.f32 %v552, %v569
    %v743 = vmul.f32 %v553, %v570
    %v744 = vmul.f32 %v554, %v571
    %v745 = vmax.f32 %v699, 1e-05
    %v746 = vmax.f32 %v704, 1e-05
    %v747 = vmax.f32 %v709, 1e-05
    %v748 = vmax.f32 %v714, 1e-05
    %v749 = vmax.f32 %v719, 1e-05
    %v750 = vmax.f32 %v724, 1e-05
    %v751 = vmax.f32 %v729, 1e-05
    %v752 = vmax.f32 %v734, 1e-05
    %v753 = vrcp.pop %v745
    %v754 = vmul.f32 %v737, %v753
    %v755 = vrcp.pop %v746
    %v756 = vmul.f32 %v738, %v755
    %v757 = vrcp.pop %v747
    %v758 = vmul.f32 %v739, %v757
    %v759 = vrcp.pop %v748
    %v760 = vmul.f32 %v740, %v759
    %v761 = vrcp.pop %v749
    %v762 = vmul.f32 %v741, %v761
    %v763 = vrcp.pop %v750
    %v764 = vmul.f32 %v742, %v763
    %v765 = vrcp.pop %v751
    %v766 = vmul.f32 %v743, %v765
    %v767 = vrcp.pop %v752
    %v768 = vmul.f32 %v744, %v767
    %v769 = vsub.s32 %v556, 17
    %v770 = vsub.s32 %v557, 17
    %v771 = vsub.s32 %v558, 17
    %v772 = vsub.s32 %v559, 17
    %v773 = vsub.s32 %v560, 17
    %v774 = vsub.s32 %v561, 17
    %v775 = vsub.s32 %v562, 17
    %v776 = vsub.s32 %v563, 17
    %vm777 = vcmp.ge.s32.totalorder %v556, 17
    %vm778 = vcmp.ge.s32.totalorder %v557, 17
    %vm779 = vcmp.ge.s32.totalorder %v558, 17
    %vm780 = vcmp.ge.s32.totalorder %v559, 17
    %vm781 = vcmp.ge.s32.totalorder %v560, 17
    %vm782 = vcmp.ge.s32.totalorder %v561, 17
    %vm783 = vcmp.ge.s32.totalorder %v562, 17
    %vm784 = vcmp.ge.s32.totalorder %v563, 17
    %vm785 = vcmp.le.s32.totalorder %v556, 63
    %vm786 = vcmp.le.s32.totalorder %v557, 63
    %vm787 = vcmp.le.s32.totalorder %v558, 63
    %vm788 = vcmp.le.s32.totalorder %v559, 63
    %vm789 = vcmp.le.s32.totalorder %v560, 63
    %vm790 = vcmp.le.s32.totalorder %v561, 63
    %vm791 = vcmp.le.s32.totalorder %v562, 63
    %vm792 = vcmp.le.s32.totalorder %v563, 63
    %vm793 = vmand %vm777, %vm785
    %vm794 = vmand %vm778, %vm786
    %vm795 = vmand %vm779, %vm787
    %vm796 = vmand %vm780, %vm788
    %vm797 = vmand %vm781, %vm789
    %vm798 = vmand %vm782, %vm790
    %vm799 = vmand %vm783, %vm791
    %vm800 = vmand %vm784, %vm792
    %vm801 = vcmp.lt.f32.partialorder %v754, 0.1
    %vm802 = vcmp.lt.f32.partialorder %v756, 0.1
    %vm803 = vcmp.lt.f32.partialorder %v758, 0.1
    %vm804 = vcmp.lt.f32.partialorder %v760, 0.1
    %vm805 = vcmp.lt.f32.partialorder %v762, 0.1
    %vm806 = vcmp.lt.f32.partialorder %v764, 0.1
    %vm807 = vcmp.lt.f32.partialorder %v766, 0.1
    %vm808 = vcmp.lt.f32.partialorder %v768, 0.1
    %vm809 = vmand %vm793, %vm801
    %vm810 = vmand %vm794, %vm802
    %vm811 = vmand %vm795, %vm803
    %vm812 = vmand %vm796, %vm804
    %vm813 = vmand %vm797, %vm805
    %vm814 = vmand %vm798, %vm806
    %vm815 = vmand %vm799, %vm807
    %vm816 = vmand %vm800, %vm808
    %v817 = vsel %vm809, %v769, 47
    %v818 = vsel %vm810, %v770, 47
    %v819 = vsel %vm811, %v771, 47
    %v820 = vsel %vm812, %v772, 47
    %v821 = vsel %vm813, %v773, 47
    %v822 = vsel %vm814, %v774, 47
    %v823 = vsel %vm815, %v775, 47
    %v824 = vsel %vm816, %v776, 47
    %vm825 = vcmp.lt.s32.totalorder %v817, %v821
    %v826 = vsel %vm825, %v817, %v821
    %vm827 = vcmp.lt.s32.totalorder %v818, %v822
    %v828 = vsel %vm827, %v818, %v822
    %vm829 = vcmp.lt.s32.totalorder %v819, %v823
    %v830 = vsel %vm829, %v819, %v823
    %vm831 = vcmp.lt.s32.totalorder %v820, %v824
    %v832 = vsel %vm831, %v820, %v824
    %vm833 = vcmp.lt.s32.totalorder %v826, %v828
    %v834 = vsel %vm833, %v826, %v828
    %vm835 = vcmp.lt.s32.totalorder %v830, %v832
    %v836 = vsel %vm835, %v830, %v832
    %vm837 = vcmp.lt.s32.totalorder %v834, %v836
    %v838 = vsel %vm837, %v834, %v836
    %v839 = vrot.slane %v838, 4
    %vm840 = vcmp.lt.s32.totalorder %v838, %v839
    %v841 = vsel %vm840, %v838, %v839
    %v842 = vrot.slane %v841, 2
    %vm843 = vcmp.lt.s32.totalorder %v841, %v842
    %v844 = vsel %vm843, %v841, %v842
    %v845 = vrot.slane %v844, 1
    %vm846 = vcmp.lt.s32.totalorder %v844, %v845
    %v847 = vsel %vm846, %v844, %v845
    %vm848 = vcmp.gt.s32.totalorder %v847, 0
    %vm849 = vcmp.lt.s32.totalorder %v847, 47
    %vm850 = vmand %vm848, %vm849
    %v851 = vsel %vm850, %v847, 64
    %vm852 = vcmp.ge.s32.totalorder %v769, %v851
    %vm853 = vcmp.ge.s32.totalorder %v770, %v851
    %vm854 = vcmp.ge.s32.totalorder %v771, %v851
    %vm855 = vcmp.ge.s32.totalorder %v772, %v851
    %vm856 = vcmp.ge.s32.totalorder %v773, %v851
    %vm857 = vcmp.ge.s32.totalorder %v774, %v851
    %vm858 = vcmp.ge.s32.totalorder %v775, %v851
    %vm859 = vcmp.ge.s32.totalorder %v776, %v851
    %vm868 = vcmask 1046528
    %v869 = vrot.slane %v754, 1
    %v870 = vrot.slane %v756, 1
    %v871 = vsel %vm868, %v869, %v870
    %v872 = vrot.slane %v758, 1
    %v873 = vsel %vm868, %v870, %v872
    %v874 = vrot.slane %v760, 1
    %v875 = vsel %vm868, %v872, %v874
    %v876 = vrot.slane %v762, 1
    %v877 = vsel %vm868, %v874, %v876
    %v878 = vrot.slane %v764, 1
    %v879 = vsel %vm868, %v876, %v878
    %v880 = vrot.slane %v766, 1
    %v881 = vsel %vm868, %v878, %v880
    %v882 = vrot.slane %v768, 1
    %v883 = vsel %vm868, %v880, %v882
    %v892 = vsel %vm868, %v882, 0.0
    %v893 = vsub.f32 %v871, %v754
    %v894 = vsub.f32 %v873, %v756
    %v895 = vsub.f32 %v875, %v758
    %v896 = vsub.f32 %v877, %v760
    %v897 = vsub.f32 %v879, %v762
    %v898 = vsub.f32 %v881, %v764
    %v899 = vsub.f32 %v883, %v766
    %v900 = vsub.f32 %v892, %v768
    %vm901 = vcmp.ge.f32.partialorder %v893, 0.0
    %vm902 = vcmp.ge.f32.partialorder %v894, 0.0
    %vm903 = vcmp.ge.f32.partialorder %v895, 0.0
    %vm904 = vcmp.ge.f32.partialorder %v896, 0.0
    %vm905 = vcmp.ge.f32.partialorder %v897, 0.0
    %vm906 = vcmp.ge.f32.partialorder %v898, 0.0
    %vm907 = vcmp.ge.f32.partialorder %v899, 0.0
    %vm908 = vcmp.ge.f32.partialorder %v900, 0.0
    %vm909 = vcmp.eq.s32.totalorder %v556, 63
    %vm910 = vcmp.eq.s32.totalorder %v557, 63
    %vm911 = vcmp.eq.s32.totalorder %v558, 63
    %vm912 = vcmp.eq.s32.totalorder %v559, 63
    %vm913 = vcmp.eq.s32.totalorder %v560, 63
    %vm914 = vcmp.eq.s32.totalorder %v561, 63
    %vm915 = vcmp.eq.s32.totalorder %v562, 63
    %vm916 = vcmp.eq.s32.totalorder %v563, 63
    %vm917 = vmor %vm901, %vm909
    %vm918 = vmor %vm902, %vm910
    %vm919 = vmor %vm903, %vm911
    %vm920 = vmor %vm904, %vm912
    %vm921 = vmor %vm905, %vm913
    %vm922 = vmor %vm906, %vm914
    %vm923 = vmor %vm907, %vm915
    %vm924 = vmor %vm908, %vm916
    %vm925 = vmand %vm793, %vm852
    %vm926 = vmand %vm794, %vm853
    %vm927 = vmand %vm795, %vm854
    %vm928 = vmand %vm796, %vm855
    %vm929 = vmand %vm797, %vm856
    %vm930 = vmand %vm798, %vm857
    %vm931 = vmand %vm799, %vm858
    %vm932 = vmand %vm800, %vm859
    %vm933 = vmand %vm925, %vm917
    %vm934 = vmand %vm926, %vm918
    %vm935 = vmand %vm927, %vm919
    %vm936 = vmand %vm928, %vm920
    %vm937 = vmand %vm929, %vm921
    %vm938 = vmand %vm930, %vm922
    %vm939 = vmand %vm931, %vm923
    %vm940 = vmand %vm932, %vm924
    %v941 = vsel %vm933, %v769, 47
    %v942 = vsel %vm934, %v770, 47
    %v943 = vsel %vm935, %v771, 47
    %v944 = vsel %vm936, %v772, 47
    %v945 = vsel %vm937, %v773, 47
    %v946 = vsel %vm938, %v774, 47
    %v947 = vsel %vm939, %v775, 47
    %v948 = vsel %vm940, %v776, 47
    %vm949 = vcmp.lt.s32.totalorder %v941, %v945
    %v950 = vsel %vm949, %v941, %v945
    %vm951 = vcmp.lt.s32.totalorder %v942, %v946
    %v952 = vsel %vm951, %v942, %v946
    %vm953 = vcmp.lt.s32.totalorder %v943, %v947
    %v954 = vsel %vm953, %v943, %v947
    %vm955 = vcmp.lt.s32.totalorder %v944, %v948
    %v956 = vsel %vm955, %v944, %v948
    %vm957 = vcmp.lt.s32.totalorder %v950, %v952
    %v958 = vsel %vm957, %v950, %v952
    %vm959 = vcmp.lt.s32.totalorder %v954, %v956
    %v960 = vsel %vm959, %v954, %v956
    %vm961 = vcmp.lt.s32.totalorder %v958, %v960
    %v962 = vsel %vm961, %v958, %v960
    %v963 = vrot.slane %v962, 4
    %vm964 = vcmp.lt.s32.totalorder %v962, %v963
    %v965 = vsel %vm964, %v962, %v963
    %v966 = vrot.slane %v965, 2
    %vm967 = vcmp.lt.s32.totalorder %v965, %v966
    %v968 = vsel %vm967, %v965, %v966
    %v969 = vrot.slane %v968, 1
    %vm970 = vcmp.lt.s32.totalorder %v968, %v969
    %v971 = vsel %vm970, %v968, %v969
    %vm972 = vcmp.lt.s32.totalorder %v971, 47
    %v973 = vsel %vm972, %v971, 0
    %vm974 = vcmp.gt.s32.totalorder %v973, 0
    %v975 = vadd.s32 %v973, 17
    %v976 = vcvt.s32.f32 %v975
    %v977 = vrcp.pop %v976
    %v978 = vmul.f32 8000.0, %v977
    %v979 = vsel %vm974, %v978, 0.0
    %980 = vst [vmem:[#allocation6] sm:$0xff] %v979
    // Predicated region
    $region17: #{tpu_custom_call.1} parent=1 // pred_check
      _
    $region18: #{tpu_custom_call.1} parent=1 // pred_check_branch
      %982 = sbr.rel (0) target = $region20
    $region19: #{tpu_custom_call.1} parent=1 // pred_region
      %s984 = ssub.s32 128, 128
      %985 = vsyncadd [#allocation5], %s984
      %s987 = sshll.u32 [#allocation6], 4
      %s988 = int_to_ptr.vmem [resolvable:$true] %s987
      %990 = dma.vmem_to_hbm [thread:$0]  %s988, 128, %s1, [#allocation5]
    $region20: #{tpu_custom_call.1} parent=1 // pred_fallthru
      _
    // Predicated region
    $region21: #{tpu_custom_call.1} parent=1 // pred_check
      _
    $region22: #{tpu_custom_call.1} parent=1 // pred_check_branch
      %992 = sbr.rel (0) target = $region24
    $region23: #{tpu_custom_call.1} parent=1 // pred_region
      %993 = dma.done [#allocation5], 128
    $region24: #{tpu_custom_call.1} parent=1 // pred_fallthru
      _
    %994 = vsyncpa [#allocation4], 1
    %995 = vsyncpa [#allocation5], 1

</llo_original>
